<compile_context>
chip_gen: v7x
topology: tpu7x:2x2x1
jax: 0.10.0
libtpu: 0.0.40
codegen_flags: <defaults>
</compile_context>

<pallas_src>
import jax
import jax.numpy as jnp
from jax.experimental import pallas as pl
from jax.experimental.pallas import tpu as pltpu

LOG_STD_MAX = 2.0
LOG_STD_MIN = -5.0

HIDDEN = 256          # fc1 / fc2 width
LANE = 128            # TPU lane width; each head gets its own 128-lane region
HEAD_W = 2 * LANE     # packed head output width (mean | log_std), lane-dense
BIAS_W = max(HIDDEN, HEAD_W)


def _round_up(a: int, b: int) -> int:
    return (a + b - 1) // b * b


def actor_kernel(x_ref, w1_ref, w2_ref, wh_ref, b_ref, out_ref):
    # Biases (f32): row 0 = b1, row 1 = b2, row 2 = packed head bias.
    b1 = b_ref[0:1, :HIDDEN]
    b2 = b_ref[1:2, :HIDDEN]
    bh = b_ref[2:3, :HEAD_W]

    # fc1 + relu (bf16 matmul operands, f32 accumulation / elementwise)
    x = x_ref[...].astype(jnp.bfloat16)
    h1 = jnp.dot(x, w1_ref[...], preferred_element_type=jnp.float32) + b1
    h1 = jnp.maximum(h1, 0.0)

    # fc2 + relu
    h2 = jnp.dot(h1.astype(jnp.bfloat16), w2_ref[...],
                 preferred_element_type=jnp.float32) + b2
    h2 = jnp.maximum(h2, 0.0)

    # fused heads: one matmul produces [mean | log_std] in a 256-lane slab
    heads = jnp.dot(h2.astype(jnp.bfloat16), wh_ref[...],
                    preferred_element_type=jnp.float32) + bh

    mean = heads[:, :LANE]
    ls = jnp.tanh(heads[:, LANE:])
    ls = LOG_STD_MIN + 0.5 * (LOG_STD_MAX - LOG_STD_MIN) * (ls + 1.0)

    # Two aligned 128-lane stores (lane-dense, unmasked).
    out_ref[:, :LANE] = mean
    out_ref[:, LANE:] = ls


def pack_params(params):
    """Pack PyTorch-style (w1,b1,w2,b2,wm,bm,ws,bs) into the kernel layout."""
    w1, b1, w2, b2, wm, bm, ws, bs = params
    act_dim = wm.shape[1]

    # Fused, lane-padded head weight: mean -> lanes [0, act_dim),
    # log_std -> lanes [LANE, LANE + act_dim). Padding lanes are zero.
    wh = jnp.zeros((HIDDEN, HEAD_W), jnp.float32)
    wh = wh.at[:, :act_dim].set(wm)
    wh = wh.at[:, LANE:LANE + act_dim].set(ws)

    # Stacked biases (kept f32).
    b = jnp.zeros((3, BIAS_W), jnp.float32)
    b = b.at[0, :HIDDEN].set(b1[0])
    b = b.at[1, :HIDDEN].set(b2[0])
    b = b.at[2, :act_dim].set(bm[0])
    b = b.at[2, LANE:LANE + act_dim].set(bs[0])

    return (w1.astype(jnp.bfloat16),
            w2.astype(jnp.bfloat16),
            wh.astype(jnp.bfloat16),
            b)


def actor_forward(x, packed_params, act_dim, *, batch_tile=512):
    """Runs the Actor forward pass as a single Pallas TPU kernel call."""
    w1, w2, wh, b = packed_params
    batch, obs_dim = x.shape

    # Batch tiling: whole batch in one step when small; otherwise stream
    # >=512-row tiles across a parallel grid (weights stay resident).
    tb = min(_round_up(batch, 8), batch_tile)
    padded = _round_up(batch, tb)
    if padded != batch:
        x = jnp.pad(x, ((0, padded - batch), (0, 0)))
    grid = (padded // tb,)

    flops = 2 * padded * HIDDEN * (obs_dim + HIDDEN + HEAD_W)
    bytes_accessed = (padded * obs_dim * 4
                      + (obs_dim * HIDDEN + HIDDEN * HIDDEN + HIDDEN * HEAD_W) * 2
                      + 3 * BIAS_W * 4
                      + padded * HEAD_W * 4)
    cost = pl.CostEstimate(flops=flops,
                           transcendentals=padded * LANE,
                           bytes_accessed=bytes_accessed)

    out = pl.pallas_call(
        actor_kernel,
        out_shape=jax.ShapeDtypeStruct((padded, HEAD_W), jnp.float32),
        grid=grid,
        in_specs=[
            pl.BlockSpec((tb, obs_dim), lambda i: (i, 0)),        # x (streamed)
            pl.BlockSpec((obs_dim, HIDDEN), lambda i: (0, 0)),    # w1 (resident)
            pl.BlockSpec((HIDDEN, HIDDEN), lambda i: (0, 0)),     # w2 (resident)
            pl.BlockSpec((HIDDEN, HEAD_W), lambda i: (0, 0)),     # fused heads
            pl.BlockSpec((3, BIAS_W), lambda i: (0, 0)),          # stacked biases
        ],
        out_specs=pl.BlockSpec((tb, HEAD_W), lambda i: (i, 0)),
        compiler_params=pltpu.CompilerParams(
            dimension_semantics=("parallel",)),
        cost_estimate=cost,
    )(x, w1, w2, wh, b)

    mean = out[:batch, :act_dim]
    log_std = out[:batch, LANE:LANE + act_dim]
    return mean, log_std


def init_params(key, obs_dim, act_dim):
    """Deterministic synthetic parameters (PyTorch-Linear-like uniform init)."""
    ks = jax.random.split(key, 8)

    def lin(kw, kb, fan_in, fan_out):
        bound = 1.0 / jnp.sqrt(fan_in)
        w = jax.random.uniform(kw, (fan_in, fan_out), jnp.float32, -bound, bound)
        b = jax.random.uniform(kb, (1, fan_out), jnp.float32, -bound, bound)
        return w, b

    w1, b1 = lin(ks[0], ks[1], obs_dim, HIDDEN)
    w2, b2 = lin(ks[2], ks[3], HIDDEN, HIDDEN)
    wm, bm = lin(ks[4], ks[5], HIDDEN, act_dim)
    ws, bs = lin(ks[6], ks[7], HIDDEN, act_dim)
    return (w1, b1, w2, b2, wm, bm, ws, bs)


def actor_forward_ref(x, params):
    """Pure-JAX reference with the same bf16-operand / f32-accum casting."""
    w1, b1, w2, b2, wm, bm, ws, bs = params
    xb = x.astype(jnp.bfloat16)
    h1 = jnp.dot(xb, w1.astype(jnp.bfloat16),
                 preferred_element_type=jnp.float32) + b1
    h1 = jnp.maximum(h1, 0.0)
    h2 = jnp.dot(h1.astype(jnp.bfloat16), w2.astype(jnp.bfloat16),
                 preferred_element_type=jnp.float32) + b2
    h2 = jnp.maximum(h2, 0.0)
    h2b = h2.astype(jnp.bfloat16)
    mean = jnp.dot(h2b, wm.astype(jnp.bfloat16),
                   preferred_element_type=jnp.float32) + bm
    ls = jnp.tanh(jnp.dot(h2b, ws.astype(jnp.bfloat16),
                          preferred_element_type=jnp.float32) + bs)
    ls = LOG_STD_MIN + 0.5 * (LOG_STD_MAX - LOG_STD_MIN) * (ls + 1.0)
    return mean, ls


if __name__ == "__main__":
    key = jax.random.PRNGKey(0)
    k_x, k_p = jax.random.split(key)

    batch = 8      # small batch
    obs_dim = 16   # prod(env.single_observation_space.shape)
    act_dim = 4    # prod(env.single_action_space.shape)

    x = jax.random.normal(k_x, (batch, obs_dim), dtype=jnp.float32)
    params = init_params(k_p, obs_dim, act_dim)
    packed = pack_params(params)

    mean, log_std = actor_forward(x, packed, act_dim)
    mean = jax.block_until_ready(mean)
    log_std = jax.block_until_ready(log_std)

    mean_ref, log_std_ref = actor_forward_ref(x, params)
    assert mean.shape == (batch, act_dim) and log_std.shape == (batch, act_dim)
    assert jnp.allclose(mean, mean_ref, atol=1e-2, rtol=1e-2)
    assert jnp.allclose(log_std, log_std_ref, atol=1e-2, rtol=1e-2)
    assert jnp.all(log_std >= LOG_STD_MIN) and jnp.all(log_std <= LOG_STD_MAX)

    # TODO(synk): get_action (Normal.rsample + tanh-squash log-prob) is RNG-based
    # sampling glue; only the deterministic forward() hot path is implemented here.

    print("KERNEL_OK")
</pallas_src>

<mosaic_0001>
module attributes {stable_mosaic.version = 11 : i64} {
  func.func @actor_kernel(%arg0: i32, %arg1: memref<8x16xf32, #tpu.memory_space<vmem>>, %arg2: memref<16x256xbf16, #tpu.memory_space<vmem>>, %arg3: memref<256x256xbf16, #tpu.memory_space<vmem>>, %arg4: memref<256x256xbf16, #tpu.memory_space<vmem>>, %arg5: memref<3x256xf32, #tpu.memory_space<vmem>>, %arg6: memref<8x256xf32, #tpu.memory_space<vmem>>) attributes {dimension_semantics = [#tpu.dimension_semantics<parallel>], iteration_bounds = array<i64: 1>, scalar_prefetch = 0 : i64, scratch_operands = 0 : i64, tpu.core_type = #tpu.core_type<tc>, window_params = [{transform_indices = @transform_0, window_bounds = array<i64: 8, 16>}, {pipeline_mode = #tpu.pipeline_mode<synchronous>, transform_indices = @transform_1, window_bounds = array<i64: 16, 256>}, {pipeline_mode = #tpu.pipeline_mode<synchronous>, transform_indices = @transform_2, window_bounds = array<i64: 256, 256>}, {pipeline_mode = #tpu.pipeline_mode<synchronous>, transform_indices = @transform_3, window_bounds = array<i64: 256, 256>}, {pipeline_mode = #tpu.pipeline_mode<synchronous>, transform_indices = @transform_4, window_bounds = array<i64: 3, 256>}, {transform_indices = @transform_5, window_bounds = array<i64: 8, 256>}]} {
    %c0 = arith.constant 0 : index
    %c0_0 = arith.constant 0 : index
    %0 = vector.load %arg5[%c0, %c0_0] : memref<3x256xf32, #tpu.memory_space<vmem>>, vector<1x256xf32>
    %c1 = arith.constant 1 : index
    %c0_1 = arith.constant 0 : index
    %1 = vector.load %arg5[%c1, %c0_1] : memref<3x256xf32, #tpu.memory_space<vmem>>, vector<1x256xf32>
    %c2 = arith.constant 2 : index
    %c0_2 = arith.constant 0 : index
    %2 = vector.load %arg5[%c2, %c0_2] : memref<3x256xf32, #tpu.memory_space<vmem>>, vector<1x256xf32>
    %c0_3 = arith.constant 0 : index
    %c0_4 = arith.constant 0 : index
    %3 = vector.load %arg1[%c0_3, %c0_4] : memref<8x16xf32, #tpu.memory_space<vmem>>, vector<8x16xf32>
    %4 = arith.truncf %3 : vector<8x16xf32> to vector<8x16xbf16>
    %c0_5 = arith.constant 0 : index
    %c0_6 = arith.constant 0 : index
    %5 = vector.load %arg2[%c0_5, %c0_6] : memref<16x256xbf16, #tpu.memory_space<vmem>>, vector<16x256xbf16>
    %cst = arith.constant dense<0.000000e+00> : vector<8x256xf32>
    %6 = tpu.matmul %4, %5, %cst {dimension_numbers = #tpu.dot_dimension_numbers<[1], [0], [0], [1], [0, 0, 1, 1], [], []>} : vector<8x16xbf16>, vector<16x256xbf16>, vector<8x256xf32> -> vector<8x256xf32>
    %7 = vector.broadcast %0 : vector<1x256xf32> to vector<8x256xf32>
    %8 = arith.addf %6, %7 : vector<8x256xf32>
    %cst_7 = arith.constant 0.000000e+00 : f32
    %9 = vector.broadcast %cst_7 : f32 to vector<8x256xf32>
    %10 = arith.maximumf %8, %9 : vector<8x256xf32>
    %11 = arith.truncf %10 : vector<8x256xf32> to vector<8x256xbf16>
    %c0_8 = arith.constant 0 : index
    %c0_9 = arith.constant 0 : index
    %12 = vector.load %arg3[%c0_8, %c0_9] : memref<256x256xbf16, #tpu.memory_space<vmem>>, vector<256x256xbf16>
    %cst_10 = arith.constant dense<0.000000e+00> : vector<8x256xf32>
    %13 = tpu.matmul %11, %12, %cst_10 {dimension_numbers = #tpu.dot_dimension_numbers<[1], [0], [0], [1], [0, 0, 1, 1], [], []>} : vector<8x256xbf16>, vector<256x256xbf16>, vector<8x256xf32> -> vector<8x256xf32>
    %14 = vector.broadcast %1 : vector<1x256xf32> to vector<8x256xf32>
    %15 = arith.addf %13, %14 : vector<8x256xf32>
    %cst_11 = arith.constant 0.000000e+00 : f32
    %16 = vector.broadcast %cst_11 : f32 to vector<8x256xf32>
    %17 = arith.maximumf %15, %16 : vector<8x256xf32>
    %18 = arith.truncf %17 : vector<8x256xf32> to vector<8x256xbf16>
    %c0_12 = arith.constant 0 : index
    %c0_13 = arith.constant 0 : index
    %19 = vector.load %arg4[%c0_12, %c0_13] : memref<256x256xbf16, #tpu.memory_space<vmem>>, vector<256x256xbf16>
    %cst_14 = arith.constant dense<0.000000e+00> : vector<8x256xf32>
    %20 = tpu.matmul %18, %19, %cst_14 {dimension_numbers = #tpu.dot_dimension_numbers<[1], [0], [0], [1], [0, 0, 1, 1], [], []>} : vector<8x256xbf16>, vector<256x256xbf16>, vector<8x256xf32> -> vector<8x256xf32>
    %21 = vector.broadcast %2 : vector<1x256xf32> to vector<8x256xf32>
    %22 = arith.addf %20, %21 : vector<8x256xf32>
    %23 = vector.extract_strided_slice %22 {offsets = [0, 0], sizes = [8, 128], strides = [1, 1]} : vector<8x256xf32> to vector<8x128xf32>
    %24 = vector.extract_strided_slice %22 {offsets = [0, 128], sizes = [8, 128], strides = [1, 1]} : vector<8x256xf32> to vector<8x128xf32>
    %25 = math.tanh %24 : vector<8x128xf32>
    %cst_15 = arith.constant 1.000000e+00 : f32
    %26 = vector.broadcast %cst_15 : f32 to vector<8x128xf32>
    %27 = arith.addf %25, %26 : vector<8x128xf32>
    %cst_16 = arith.constant 3.500000e+00 : f32
    %28 = vector.broadcast %cst_16 : f32 to vector<8x128xf32>
    %29 = arith.mulf %28, %27 : vector<8x128xf32>
    %cst_17 = arith.constant -5.000000e+00 : f32
    %30 = vector.broadcast %cst_17 : f32 to vector<8x128xf32>
    %31 = arith.addf %30, %29 : vector<8x128xf32>
    %c0_18 = arith.constant 0 : index
    %c0_19 = arith.constant 0 : index
    %32 = vector.load %arg6[%c0_18, %c0_19] : memref<8x256xf32, #tpu.memory_space<vmem>>, vector<8x128xf32>
    tpu.vector_store %arg6[%c0_18, %c0_19], %23 {strides = array<i32>} : memref<8x256xf32, #tpu.memory_space<vmem>>, vector<8x128xf32>,
    %c0_20 = arith.constant 0 : index
    %c128 = arith.constant 128 : index
    %33 = vector.load %arg6[%c0_20, %c128] : memref<8x256xf32, #tpu.memory_space<vmem>>, vector<8x128xf32>
    tpu.vector_store %arg6[%c0_20, %c128], %31 {strides = array<i32>} : memref<8x256xf32, #tpu.memory_space<vmem>>, vector<8x128xf32>,
    return
  }
  func.func @transform_0(%arg0: i32) -> (i32, i32) {
    %c0_i32 = arith.constant 0 : i32
    %c0_i32_0 = arith.constant 0 : i32
    return %arg0, %c0_i32 : i32, i32
  }
  func.func @transform_1(%arg0: i32) -> (i32, i32) {
    %c0_i32 = arith.constant 0 : i32
    %c0_i32_0 = arith.constant 0 : i32
    %c0_i32_1 = arith.constant 0 : i32
    return %c0_i32, %c0_i32_0 : i32, i32
  }
  func.func @transform_2(%arg0: i32) -> (i32, i32) {
    %c0_i32 = arith.constant 0 : i32
    %c0_i32_0 = arith.constant 0 : i32
    %c0_i32_1 = arith.constant 0 : i32
    return %c0_i32, %c0_i32_0 : i32, i32
  }
  func.func @transform_3(%arg0: i32) -> (i32, i32) {
    %c0_i32 = arith.constant 0 : i32
    %c0_i32_0 = arith.constant 0 : i32
    %c0_i32_1 = arith.constant 0 : i32
    return %c0_i32, %c0_i32_0 : i32, i32
  }
  func.func @transform_4(%arg0: i32) -> (i32, i32) {
    %c0_i32 = arith.constant 0 : i32
    %c0_i32_0 = arith.constant 0 : i32
    %c0_i32_1 = arith.constant 0 : i32
    return %c0_i32, %c0_i32_0 : i32, i32
  }
  func.func @transform_5(%arg0: i32) -> (i32, i32) {
    %c0_i32 = arith.constant 0 : i32
    %c0_i32_0 = arith.constant 0 : i32
    return %arg0, %c0_i32 : i32, i32
  }
}

</mosaic_0001>

<llo_original>
// kernel: tpu_custom_call.1
$region0: #{tpu_custom_call.1}
  #allocation0 [shape = 'u32[]', space=smem, size = 0x4, offset = 0x4, fixed_abs, tag = 'smem constant byte address 0x4 - core index']
  #allocation1 [shape = 'u32[144,128]{1,0:T(1,128)}', space=vmem, size = 0x12000, scoped, tag = 'internal scratch']
  %s0 = inlined_call_operand.hbm [shape: f32[8,16], index: 0, kind: input, shape index: {}]
  %s1 = inlined_call_operand.hbm [shape: bf16[16,256], index: 1, kind: input, shape index: {}]
  %s2 = inlined_call_operand.hbm [shape: bf16[256,256], index: 2, kind: input, shape index: {}]
  %s3 = inlined_call_operand.hbm [shape: bf16[256,256], index: 3, kind: input, shape index: {}]
  %s4 = inlined_call_operand.vmem [shape: f32[3,256], index: 4, kind: input, shape index: {}]
  %s5 = inlined_call_operand.hbm [shape: f32[8,256], index: 5, kind: output, shape index: {}]
  %s6 = sld [smem:[#allocation0]]
  $region46: #{tpu_custom_call.1} parent=0
    _
  %s8 = ssub.s32 1, %s6
  %s9 = scalar_select 0, %s8, %s6
  $region1: #{tpu_custom_call.1} parent=0
    #allocation2 [shape = 'u8[4096]{0}', space=vmem, size = 0x1000, scoped, tag = 'input window, operand 0, single buffered']
    #allocation3 [shape = 's32[1]{0}', space=sflag, size = 0x4, scoped, tag = 'scoped memory for tpu_custom_call.1']
    #allocation4 [shape = 's32[1]{0}', space=sflag, size = 0x4, scoped, tag = 'scoped memory for tpu_custom_call.1']
    #allocation5 [shape = 'u8[8192]{0}', space=vmem, size = 0x2000, scoped, tag = 'input window, operand 1, single buffered']
    #allocation6 [shape = 's32[1]{0}', space=sflag, size = 0x4, scoped, tag = 'scoped memory for tpu_custom_call.1']
    #allocation7 [shape = 'u8[131072]{0}', space=vmem, size = 0x20000, scoped, tag = 'input window, operand 2, single buffered']
    #allocation8 [shape = 'u8[131072]{0}', space=vmem, size = 0x20000, scoped, tag = 'input window, operand 3, single buffered']
    #allocation9 [shape = 's32[1]{0}', space=sflag, size = 0x4, scoped, tag = 'scoped memory for tpu_custom_call.1']
    #allocation10 [shape = 'u8[8192]{0}', space=vmem, size = 0x2000, scoped, tag = 'output window, operand 0, single buffered']
    %10 = vsyncpa [#allocation3], 0
    %11 = vsyncpa [#allocation6], 0
    %12 = vsyncpa [#allocation9], 0
    %13 = vsyncpa [#allocation4], 0
    // Predicated region
    $region2: #{tpu_custom_call.1} parent=1 // pred_check
      _
    $region3: #{tpu_custom_call.1} parent=1 // pred_check_branch
      %15 = sbr.rel (0) target = $region5
    $region4: #{tpu_custom_call.1} parent=1 // pred_region
      %s17 = ssub.s32 128, 128
      %18 = vsyncadd [#allocation3], %s17
      %s20 = sshll.u32 [#allocation2], 4
      %s21 = int_to_ptr.vmem [resolvable:$true] %s20
      %23 = dma.hbm_to_vmem [thread:$0]  %s0, 128, %s21, [#allocation3]
    $region5: #{tpu_custom_call.1} parent=1 // pred_fallthru
      _
    // Predicated region
    $region6: #{tpu_custom_call.1} parent=1 // pred_check
      _
    $region7: #{tpu_custom_call.1} parent=1 // pred_check_branch
      %25 = sbr.rel (0) target = $region9
    $region8: #{tpu_custom_call.1} parent=1 // pred_region
      %s27 = ssub.s32 256, 256
      %28 = vsyncadd [#allocation6], %s27
      %s29 = sshll.u32 [#allocation5], 4
      %s30 = int_to_ptr.vmem [resolvable:$true] %s29
      %35 = dma.hbm_to_vmem [thread:$0]  %s1, 256, %s30, [#allocation6], 128, 128, 8
    $region9: #{tpu_custom_call.1} parent=1 // pred_fallthru
      _
    // Predicated region
    $region10: #{tpu_custom_call.1} parent=1 // pred_check
      _
    $region11: #{tpu_custom_call.1} parent=1 // pred_check_branch
      %37 = sbr.rel (0) target = $region13
    $region12: #{tpu_custom_call.1} parent=1 // pred_region
      %s39 = ssub.s32 4096, 4096
      %40 = vsyncadd [#allocation6], %s39
      %s41 = sshll.u32 [#allocation7], 4
      %s42 = int_to_ptr.vmem [resolvable:$true] %s41
      %47 = dma.hbm_to_vmem [thread:$0]  %s2, 4096, %s42, [#allocation6], 128, 128, 8
    $region13: #{tpu_custom_call.1} parent=1 // pred_fallthru
      _
    // Predicated region
    $region14: #{tpu_custom_call.1} parent=1 // pred_check
      _
    $region15: #{tpu_custom_call.1} parent=1 // pred_check_branch
      %49 = sbr.rel (0) target = $region17
    $region16: #{tpu_custom_call.1} parent=1 // pred_region
      %s51 = ssub.s32 4096, 4096
      %52 = vsyncadd [#allocation9], %s51
      %s53 = sshll.u32 [#allocation8], 4
      %s54 = int_to_ptr.vmem [resolvable:$true] %s53
      %59 = dma.hbm_to_vmem [thread:$0]  %s3, 4096, %s54, [#allocation9], 128, 128, 8
    $region17: #{tpu_custom_call.1} parent=1 // pred_fallthru
      _
    // Predicated region
    $region18: #{tpu_custom_call.1} parent=1 // pred_check
      _
    $region19: #{tpu_custom_call.1} parent=1 // pred_check_branch
      %61 = sbr.rel (0) target = $region21
    $region20: #{tpu_custom_call.1} parent=1 // pred_region
      _
    $region21: #{tpu_custom_call.1} parent=1 // pred_fallthru
      _
    // Predicated region
    $region22: #{tpu_custom_call.1} parent=1 // pred_check
      _
    $region23: #{tpu_custom_call.1} parent=1 // pred_check_branch
      %63 = sbr.rel (0) target = $region25
    $region24: #{tpu_custom_call.1} parent=1 // pred_region
      %64 = dma.done [#allocation3], 128
    $region25: #{tpu_custom_call.1} parent=1 // pred_fallthru
      _
    // Predicated region
    $region26: #{tpu_custom_call.1} parent=1 // pred_check
      _
    $region27: #{tpu_custom_call.1} parent=1 // pred_check_branch
      %66 = sbr.rel (0) target = $region29
    $region28: #{tpu_custom_call.1} parent=1 // pred_region
      %67 = dma.done [#allocation6], 256
    $region29: #{tpu_custom_call.1} parent=1 // pred_fallthru
      _
    // Predicated region
    $region30: #{tpu_custom_call.1} parent=1 // pred_check
      _
    $region31: #{tpu_custom_call.1} parent=1 // pred_check_branch
      %69 = sbr.rel (0) target = $region33
    $region32: #{tpu_custom_call.1} parent=1 // pred_region
      %70 = dma.done [#allocation6], 4096
    $region33: #{tpu_custom_call.1} parent=1 // pred_fallthru
      _
    // Predicated region
    $region34: #{tpu_custom_call.1} parent=1 // pred_check
      _
    $region35: #{tpu_custom_call.1} parent=1 // pred_check_branch
      %72 = sbr.rel (0) target = $region37
    $region36: #{tpu_custom_call.1} parent=1 // pred_region
      %73 = dma.done [#allocation9], 4096
    $region37: #{tpu_custom_call.1} parent=1 // pred_fallthru
      _
    %v75 = vld [vmem:[%s4] ss:$4 sm:$0x3]
    %s76 = scalar_lea.vmem %s4, 1
    %v77 = vld [vmem:[%s76] ss:$4 sm:$0x3]
    %s78 = scalar_lea.vmem %s4, 2
    %v79 = vld [vmem:[%s78] ss:$4 sm:$0x3]
    %v80 = vld [vmem:[#allocation2] sm:$0xff]
    %v81 = vpack.c.bf16 %v80, %v80
    %v82 = vld [vmem:[#allocation5] sm:$0xff]
    %v83 = vld [vmem:[#allocation5 + $0x8] sm:$0xff]
    %v85 = vlaneseq
    %v86 = vshrl.u32 %v85, 7
    %v87 = vsub.s32 0, %v86
    %v88 = vrot.slane %v75, %v87
    %v89 = vlaneseq
    %v90 = vshrl.u32 %v89, 7
    %v91 = vsub.s32 1, %v90
    %v92 = vrot.slane %v75, %v91
    %v97 = vunpack.c.l.b16 %v82
    %v98 = vunpack.c.h.b16 %v82
    %v99 = vunpack.c.l.b16 %v83
    %v100 = vunpack.c.h.b16 %v83
    %v101 = vpack.c.b16 %v99, %v97
    %v102 = vpack.c.b16 %v100, %v98
    %vm105 = vcmask 130048
    %v107 = vsel %vm105, %v81, 0
    %109 = vmatprep.subr.bf16.mxu0 %v102
    %110 = vmatpush1.bf16.msra.mxu0 %v101
    %111 = vmatprep.subr.bf16.mxu0 0
    %112 = vmatpush1.bf16.msra.mxu0 0
    %113 = vmatprep.subr.bf16.mxu0 0
    %114 = vmatpush1.bf16.msra.mxu0 0
    %115 = vmatprep.subr.bf16.mxu0 0
    %116 = vmatpush1.bf16.msra.mxu0 0
    %117 = vmatprep.subr.bf16.mxu0 0
    %118 = vmatpush1.bf16.msra.mxu0 0
    %119 = vmatprep.subr.bf16.mxu0 0
    %120 = vmatpush1.bf16.msra.mxu0 0
    %121 = vmatprep.subr.bf16.mxu0 0
    %122 = vmatpush1.bf16.msra.mxu0 0
    %123 = vmatprep.subr.bf16.mxu0 0
    %124 = vmatpush1.bf16.msra.mxu0 0
    %125 = vmatprep.subr.bf16.mxu0 0
    %126 = vmatpush1.bf16.msra.mxu0 0
    %127 = vmatprep.subr.bf16.mxu0 0
    %128 = vmatpush1.bf16.msra.mxu0 0
    %129 = vmatprep.subr.bf16.mxu0 0
    %130 = vmatpush1.bf16.msra.mxu0 0
    %131 = vmatprep.subr.bf16.mxu0 0
    %132 = vmatpush1.bf16.msra.mxu0 0
    %133 = vmatprep.subr.bf16.mxu0 0
    %134 = vmatpush1.bf16.msra.mxu0 0
    %135 = vmatprep.subr.bf16.mxu0 0
    %136 = vmatpush1.bf16.msra.mxu0 0
    %137 = vmatprep.subr.bf16.mxu0 0
    %138 = vmatpush1.bf16.msra.mxu0 0
    %139 = vmatprep.subr.bf16.mxu0 0
    %140 = vmatpush1.bf16.msra.mxu0 0
    %141 = vmatprep.mubr.bf16.mxu0 0
    %142 = vmatmul.mubr.bf16.gmra.mrb[0].mxu0 %v107
    %v143 = vpop.f32.mrb[0].mxu0
    %v144 = vadd.f32 %v88, %v143
    %v145 = vpop.f32.mrb[0].mxu0
    %v146 = vadd.f32 %v92, %v145
    %v147 = vpop.f32.mrb[0].mxu0
    %v148 = vpop.f32.mrb[0].mxu0
    %149 = vdwg.mxu0
    %v150 = vmax.f32 %v144, 0.0
    %v151 = vmax.f32 %v146, 0.0
    %v152 = vpack.c.bf16 %v150, %v150
    %v153 = vpack.c.bf16 %v151, %v151
    %v154 = vld [vmem:[#allocation7] sm:$0xff]
    %v155 = vld [vmem:[#allocation7 + $0x8] sm:$0xff]
    %v156 = vld [vmem:[#allocation7 + $0x10] sm:$0xff]
    %v157 = vld [vmem:[#allocation7 + $0x18] sm:$0xff]
    %v158 = vld [vmem:[#allocation7 + $0x20] sm:$0xff]
    %v159 = vld [vmem:[#allocation7 + $0x28] sm:$0xff]
    %v160 = vld [vmem:[#allocation7 + $0x30] sm:$0xff]
    %v161 = vld [vmem:[#allocation7 + $0x38] sm:$0xff]
    %v162 = vld [vmem:[#allocation7 + $0x40] sm:$0xff]
    %v163 = vld [vmem:[#allocation7 + $0x48] sm:$0xff]
    %v164 = vld [vmem:[#allocation7 + $0x50] sm:$0xff]
    %v165 = vld [vmem:[#allocation7 + $0x58] sm:$0xff]
    %v166 = vld [vmem:[#allocation7 + $0x60] sm:$0xff]
    %v167 = vld [vmem:[#allocation7 + $0x68] sm:$0xff]
    %v168 = vld [vmem:[#allocation7 + $0x70] sm:$0xff]
    %v169 = vld [vmem:[#allocation7 + $0x78] sm:$0xff]
    %v170 = vld [vmem:[#allocation7 + $0x80] sm:$0xff]
    %v171 = vld [vmem:[#allocation7 + $0x88] sm:$0xff]
    %v172 = vld [vmem:[#allocation7 + $0x90] sm:$0xff]
    %v173 = vld [vmem:[#allocation7 + $0x98] sm:$0xff]
    %v174 = vld [vmem:[#allocation7 + $0xa0] sm:$0xff]
    %v175 = vld [vmem:[#allocation7 + $0xa8] sm:$0xff]
    %v176 = vld [vmem:[#allocation7 + $0xb0] sm:$0xff]
    %v177 = vld [vmem:[#allocation7 + $0xb8] sm:$0xff]
    %v178 = vld [vmem:[#allocation7 + $0xc0] sm:$0xff]
    %v179 = vld [vmem:[#allocation7 + $0xc8] sm:$0xff]
    %v180 = vld [vmem:[#allocation7 + $0xd0] sm:$0xff]
    %v181 = vld [vmem:[#allocation7 + $0xd8] sm:$0xff]
    %v182 = vld [vmem:[#allocation7 + $0xe0] sm:$0xff]
    %v183 = vld [vmem:[#allocation7 + $0xe8] sm:$0xff]
    %v184 = vld [vmem:[#allocation7 + $0xf0] sm:$0xff]
    %v185 = vld [vmem:[#allocation7 + $0xf8] sm:$0xff]
    %v187 = vlaneseq
    %v188 = vshrl.u32 %v187, 7
    %v189 = vsub.s32 0, %v188
    %v190 = vrot.slane %v77, %v189
    %v191 = vlaneseq
    %v192 = vshrl.u32 %v191, 7
    %v193 = vsub.s32 1, %v192
    %v194 = vrot.slane %v77, %v193
    %v229 = vunpack.c.l.b16 %v154
    %v230 = vunpack.c.h.b16 %v154
    %v231 = vunpack.c.l.b16 %v155
    %v232 = vunpack.c.h.b16 %v155
    %v233 = vunpack.c.l.b16 %v156
    %v234 = vunpack.c.h.b16 %v156
    %v235 = vunpack.c.l.b16 %v157
    %v236 = vunpack.c.h.b16 %v157
    %v237 = vunpack.c.l.b16 %v158
    %v238 = vunpack.c.h.b16 %v158
    %v239 = vunpack.c.l.b16 %v159
    %v240 = vunpack.c.h.b16 %v159
    %v241 = vunpack.c.l.b16 %v160
    %v242 = vunpack.c.h.b16 %v160
    %v243 = vunpack.c.l.b16 %v161
    %v244 = vunpack.c.h.b16 %v161
    %v245 = vunpack.c.l.b16 %v162
    %v246 = vunpack.c.h.b16 %v162
    %v247 = vunpack.c.l.b16 %v163
    %v248 = vunpack.c.h.b16 %v163
    %v249 = vunpack.c.l.b16 %v164
    %v250 = vunpack.c.h.b16 %v164
    %v251 = vunpack.c.l.b16 %v165
    %v252 = vunpack.c.h.b16 %v165
    %v253 = vunpack.c.l.b16 %v166
    %v254 = vunpack.c.h.b16 %v166
    %v255 = vunpack.c.l.b16 %v167
    %v256 = vunpack.c.h.b16 %v167
    %v257 = vunpack.c.l.b16 %v168
    %v258 = vunpack.c.h.b16 %v168
    %v259 = vunpack.c.l.b16 %v169
    %v260 = vunpack.c.h.b16 %v169
    %v261 = vunpack.c.l.b16 %v170
    %v262 = vunpack.c.h.b16 %v170
    %v263 = vunpack.c.l.b16 %v171
    %v264 = vunpack.c.h.b16 %v171
    %v265 = vunpack.c.l.b16 %v172
    %v266 = vunpack.c.h.b16 %v172
    %v267 = vunpack.c.l.b16 %v173
    %v268 = vunpack.c.h.b16 %v173
    %v269 = vunpack.c.l.b16 %v174
    %v270 = vunpack.c.h.b16 %v174
    %v271 = vunpack.c.l.b16 %v175
    %v272 = vunpack.c.h.b16 %v175
    %v273 = vunpack.c.l.b16 %v176
    %v274 = vunpack.c.h.b16 %v176
    %v275 = vunpack.c.l.b16 %v177
    %v276 = vunpack.c.h.b16 %v177
    %v277 = vunpack.c.l.b16 %v178
    %v278 = vunpack.c.h.b16 %v178
    %v279 = vunpack.c.l.b16 %v179
    %v280 = vunpack.c.h.b16 %v179
    %v281 = vunpack.c.l.b16 %v180
    %v282 = vunpack.c.h.b16 %v180
    %v283 = vunpack.c.l.b16 %v181
    %v284 = vunpack.c.h.b16 %v181
    %v285 = vunpack.c.l.b16 %v182
    %v286 = vunpack.c.h.b16 %v182
    %v287 = vunpack.c.l.b16 %v183
    %v288 = vunpack.c.h.b16 %v183
    %v289 = vunpack.c.l.b16 %v184
    %v290 = vunpack.c.h.b16 %v184
    %v291 = vunpack.c.l.b16 %v185
    %v292 = vunpack.c.h.b16 %v185
    %v293 = vpack.c.b16 %v231, %v229
    %v294 = vpack.c.b16 %v232, %v230
    %v295 = vpack.c.b16 %v235, %v233
    %v296 = vpack.c.b16 %v236, %v234
    %v297 = vpack.c.b16 %v239, %v237
    %v298 = vpack.c.b16 %v240, %v238
    %v299 = vpack.c.b16 %v243, %v241
    %v300 = vpack.c.b16 %v244, %v242
    %v301 = vpack.c.b16 %v247, %v245
    %v302 = vpack.c.b16 %v248, %v246
    %v303 = vpack.c.b16 %v251, %v249
    %v304 = vpack.c.b16 %v252, %v250
    %v305 = vpack.c.b16 %v255, %v253
    %v306 = vpack.c.b16 %v256, %v254
    %v307 = vpack.c.b16 %v259, %v257
    %v308 = vpack.c.b16 %v260, %v258
    %v309 = vpack.c.b16 %v263, %v261
    %v310 = vpack.c.b16 %v264, %v262
    %v311 = vpack.c.b16 %v267, %v265
    %v312 = vpack.c.b16 %v268, %v266
    %v313 = vpack.c.b16 %v271, %v269
    %v314 = vpack.c.b16 %v272, %v270
    %v315 = vpack.c.b16 %v275, %v273
    %v316 = vpack.c.b16 %v276, %v274
    %v317 = vpack.c.b16 %v279, %v277
    %v318 = vpack.c.b16 %v280, %v278
    %v319 = vpack.c.b16 %v283, %v281
    %v320 = vpack.c.b16 %v284, %v282
    %v321 = vpack.c.b16 %v287, %v285
    %v322 = vpack.c.b16 %v288, %v286
    %v323 = vpack.c.b16 %v291, %v289
    %v324 = vpack.c.b16 %v292, %v290
    %357 = vmatprep.subr.bf16.mxu0 %v294
    %358 = vmatpush1.bf16.msra.mxu0 %v293
    %359 = vmatprep.subr.bf16.mxu0 %v296
    %360 = vmatpush1.bf16.msra.mxu0 %v295
    %361 = vmatprep.subr.bf16.mxu0 %v298
    %362 = vmatpush1.bf16.msra.mxu0 %v297
    %363 = vmatprep.subr.bf16.mxu0 %v300
    %364 = vmatpush1.bf16.msra.mxu0 %v299
    %365 = vmatprep.subr.bf16.mxu0 %v302
    %366 = vmatpush1.bf16.msra.mxu0 %v301
    %367 = vmatprep.subr.bf16.mxu0 %v304
    %368 = vmatpush1.bf16.msra.mxu0 %v303
    %369 = vmatprep.subr.bf16.mxu0 %v306
    %370 = vmatpush1.bf16.msra.mxu0 %v305
    %371 = vmatprep.subr.bf16.mxu0 %v308
    %372 = vmatpush1.bf16.msra.mxu0 %v307
    %373 = vmatprep.subr.bf16.mxu0 %v310
    %374 = vmatpush1.bf16.msra.mxu0 %v309
    %375 = vmatprep.subr.bf16.mxu0 %v312
    %376 = vmatpush1.bf16.msra.mxu0 %v311
    %377 = vmatprep.subr.bf16.mxu0 %v314
    %378 = vmatpush1.bf16.msra.mxu0 %v313
    %379 = vmatprep.subr.bf16.mxu0 %v316
    %380 = vmatpush1.bf16.msra.mxu0 %v315
    %381 = vmatprep.subr.bf16.mxu0 %v318
    %382 = vmatpush1.bf16.msra.mxu0 %v317
    %383 = vmatprep.subr.bf16.mxu0 %v320
    %384 = vmatpush1.bf16.msra.mxu0 %v319
    %385 = vmatprep.subr.bf16.mxu0 %v322
    %386 = vmatpush1.bf16.msra.mxu0 %v321
    %387 = vmatprep.subr.bf16.mxu0 %v324
    %388 = vmatpush1.bf16.msra.mxu0 %v323
    %389 = vmatprep.mubr.bf16.mxu0 %v153
    %390 = vmatmul.mubr.bf16.gmra.mrb[0].mxu0 %v152
    %v391 = vpop.f32.mrb[0].mxu0
    %v392 = vadd.f32 %v190, %v391
    %v393 = vpop.f32.mrb[0].mxu0
    %v394 = vadd.f32 %v194, %v393
    %v395 = vpop.f32.mrb[0].mxu0
    %v396 = vpop.f32.mrb[0].mxu0
    %397 = vdwg.mxu0
    %v398 = vmax.f32 %v392, 0.0
    %v399 = vmax.f32 %v394, 0.0
    %v400 = vpack.c.bf16 %v398, %v398
    %v401 = vpack.c.bf16 %v399, %v399
    %v402 = vld [vmem:[#allocation8] sm:$0xff]
    %v403 = vld [vmem:[#allocation8 + $0x8] sm:$0xff]
    %v404 = vld [vmem:[#allocation8 + $0x10] sm:$0xff]
    %v405 = vld [vmem:[#allocation8 + $0x18] sm:$0xff]
    %v406 = vld [vmem:[#allocation8 + $0x20] sm:$0xff]
    %v407 = vld [vmem:[#allocation8 + $0x28] sm:$0xff]
    %v408 = vld [vmem:[#allocation8 + $0x30] sm:$0xff]
    %v409 = vld [vmem:[#allocation8 + $0x38] sm:$0xff]
    %v410 = vld [vmem:[#allocation8 + $0x40] sm:$0xff]
    %v411 = vld [vmem:[#allocation8 + $0x48] sm:$0xff]
    %v412 = vld [vmem:[#allocation8 + $0x50] sm:$0xff]
    %v413 = vld [vmem:[#allocation8 + $0x58] sm:$0xff]
    %v414 = vld [vmem:[#allocation8 + $0x60] sm:$0xff]
    %v415 = vld [vmem:[#allocation8 + $0x68] sm:$0xff]
    %v416 = vld [vmem:[#allocation8 + $0x70] sm:$0xff]
    %v417 = vld [vmem:[#allocation8 + $0x78] sm:$0xff]
    %v418 = vld [vmem:[#allocation8 + $0x80] sm:$0xff]
    %v419 = vld [vmem:[#allocation8 + $0x88] sm:$0xff]
    %v420 = vld [vmem:[#allocation8 + $0x90] sm:$0xff]
    %v421 = vld [vmem:[#allocation8 + $0x98] sm:$0xff]
    %v422 = vld [vmem:[#allocation8 + $0xa0] sm:$0xff]
    %v423 = vld [vmem:[#allocation8 + $0xa8] sm:$0xff]
    %v424 = vld [vmem:[#allocation8 + $0xb0] sm:$0xff]
    %v425 = vld [vmem:[#allocation8 + $0xb8] sm:$0xff]
    %v426 = vld [vmem:[#allocation8 + $0xc0] sm:$0xff]
    %v427 = vld [vmem:[#allocation8 + $0xc8] sm:$0xff]
    %v428 = vld [vmem:[#allocation8 + $0xd0] sm:$0xff]
    %v429 = vld [vmem:[#allocation8 + $0xd8] sm:$0xff]
    %v430 = vld [vmem:[#allocation8 + $0xe0] sm:$0xff]
    %v431 = vld [vmem:[#allocation8 + $0xe8] sm:$0xff]
    %v432 = vld [vmem:[#allocation8 + $0xf0] sm:$0xff]
    %v433 = vld [vmem:[#allocation8 + $0xf8] sm:$0xff]
    %v435 = vlaneseq
    %v436 = vshrl.u32 %v435, 7
    %v437 = vsub.s32 0, %v436
    %v438 = vrot.slane %v79, %v437
    %v439 = vlaneseq
    %v440 = vshrl.u32 %v439, 7
    %v441 = vsub.s32 1, %v440
    %v442 = vrot.slane %v79, %v441
    %v477 = vunpack.c.l.b16 %v402
    %v478 = vunpack.c.h.b16 %v402
    %v479 = vunpack.c.l.b16 %v403
    %v480 = vunpack.c.h.b16 %v403
    %v481 = vunpack.c.l.b16 %v404
    %v482 = vunpack.c.h.b16 %v404
    %v483 = vunpack.c.l.b16 %v405
    %v484 = vunpack.c.h.b16 %v405
    %v485 = vunpack.c.l.b16 %v406
    %v486 = vunpack.c.h.b16 %v406
    %v487 = vunpack.c.l.b16 %v407
    %v488 = vunpack.c.h.b16 %v407
    %v489 = vunpack.c.l.b16 %v408
    %v490 = vunpack.c.h.b16 %v408
    %v491 = vunpack.c.l.b16 %v409
    %v492 = vunpack.c.h.b16 %v409
    %v493 = vunpack.c.l.b16 %v410
    %v494 = vunpack.c.h.b16 %v410
    %v495 = vunpack.c.l.b16 %v411
    %v496 = vunpack.c.h.b16 %v411
    %v497 = vunpack.c.l.b16 %v412
    %v498 = vunpack.c.h.b16 %v412
    %v499 = vunpack.c.l.b16 %v413
    %v500 = vunpack.c.h.b16 %v413
    %v501 = vunpack.c.l.b16 %v414
    %v502 = vunpack.c.h.b16 %v414
    %v503 = vunpack.c.l.b16 %v415
    %v504 = vunpack.c.h.b16 %v415
    %v505 = vunpack.c.l.b16 %v416
    %v506 = vunpack.c.h.b16 %v416
    %v507 = vunpack.c.l.b16 %v417
    %v508 = vunpack.c.h.b16 %v417
    %v509 = vunpack.c.l.b16 %v418
    %v510 = vunpack.c.h.b16 %v418
    %v511 = vunpack.c.l.b16 %v419
    %v512 = vunpack.c.h.b16 %v419
    %v513 = vunpack.c.l.b16 %v420
    %v514 = vunpack.c.h.b16 %v420
    %v515 = vunpack.c.l.b16 %v421
    %v516 = vunpack.c.h.b16 %v421
    %v517 = vunpack.c.l.b16 %v422
    %v518 = vunpack.c.h.b16 %v422
    %v519 = vunpack.c.l.b16 %v423
    %v520 = vunpack.c.h.b16 %v423
    %v521 = vunpack.c.l.b16 %v424
    %v522 = vunpack.c.h.b16 %v424
    %v523 = vunpack.c.l.b16 %v425
    %v524 = vunpack.c.h.b16 %v425
    %v525 = vunpack.c.l.b16 %v426
    %v526 = vunpack.c.h.b16 %v426
    %v527 = vunpack.c.l.b16 %v427
    %v528 = vunpack.c.h.b16 %v427
    %v529 = vunpack.c.l.b16 %v428
    %v530 = vunpack.c.h.b16 %v428
    %v531 = vunpack.c.l.b16 %v429
    %v532 = vunpack.c.h.b16 %v429
    %v533 = vunpack.c.l.b16 %v430
    %v534 = vunpack.c.h.b16 %v430
    %v535 = vunpack.c.l.b16 %v431
    %v536 = vunpack.c.h.b16 %v431
    %v537 = vunpack.c.l.b16 %v432
    %v538 = vunpack.c.h.b16 %v432
    %v539 = vunpack.c.l.b16 %v433
    %v540 = vunpack.c.h.b16 %v433
    %v541 = vpack.c.b16 %v479, %v477
    %v542 = vpack.c.b16 %v480, %v478
    %v543 = vpack.c.b16 %v483, %v481
    %v544 = vpack.c.b16 %v484, %v482
    %v545 = vpack.c.b16 %v487, %v485
    %v546 = vpack.c.b16 %v488, %v486
    %v547 = vpack.c.b16 %v491, %v489
    %v548 = vpack.c.b16 %v492, %v490
    %v549 = vpack.c.b16 %v495, %v493
    %v550 = vpack.c.b16 %v496, %v494
    %v551 = vpack.c.b16 %v499, %v497
    %v552 = vpack.c.b16 %v500, %v498
    %v553 = vpack.c.b16 %v503, %v501
    %v554 = vpack.c.b16 %v504, %v502
    %v555 = vpack.c.b16 %v507, %v505
    %v556 = vpack.c.b16 %v508, %v506
    %v557 = vpack.c.b16 %v511, %v509
    %v558 = vpack.c.b16 %v512, %v510
    %v559 = vpack.c.b16 %v515, %v513
    %v560 = vpack.c.b16 %v516, %v514
    %v561 = vpack.c.b16 %v519, %v517
    %v562 = vpack.c.b16 %v520, %v518
    %v563 = vpack.c.b16 %v523, %v521
    %v564 = vpack.c.b16 %v524, %v522
    %v565 = vpack.c.b16 %v527, %v525
    %v566 = vpack.c.b16 %v528, %v526
    %v567 = vpack.c.b16 %v531, %v529
    %v568 = vpack.c.b16 %v532, %v530
    %v569 = vpack.c.b16 %v535, %v533
    %v570 = vpack.c.b16 %v536, %v534
    %v571 = vpack.c.b16 %v539, %v537
    %v572 = vpack.c.b16 %v540, %v538
    %605 = vmatprep.subr.bf16.mxu0 %v542
    %606 = vmatpush1.bf16.msra.mxu0 %v541
    %607 = vmatprep.subr.bf16.mxu0 %v544
    %608 = vmatpush1.bf16.msra.mxu0 %v543
    %609 = vmatprep.subr.bf16.mxu0 %v546
    %610 = vmatpush1.bf16.msra.mxu0 %v545
    %611 = vmatprep.subr.bf16.mxu0 %v548
    %612 = vmatpush1.bf16.msra.mxu0 %v547
    %613 = vmatprep.subr.bf16.mxu0 %v550
    %614 = vmatpush1.bf16.msra.mxu0 %v549
    %615 = vmatprep.subr.bf16.mxu0 %v552
    %616 = vmatpush1.bf16.msra.mxu0 %v551
    %617 = vmatprep.subr.bf16.mxu0 %v554
    %618 = vmatpush1.bf16.msra.mxu0 %v553
    %619 = vmatprep.subr.bf16.mxu0 %v556
    %620 = vmatpush1.bf16.msra.mxu0 %v555
    %621 = vmatprep.subr.bf16.mxu0 %v558
    %622 = vmatpush1.bf16.msra.mxu0 %v557
    %623 = vmatprep.subr.bf16.mxu0 %v560
    %624 = vmatpush1.bf16.msra.mxu0 %v559
    %625 = vmatprep.subr.bf16.mxu0 %v562
    %626 = vmatpush1.bf16.msra.mxu0 %v561
    %627 = vmatprep.subr.bf16.mxu0 %v564
    %628 = vmatpush1.bf16.msra.mxu0 %v563
    %629 = vmatprep.subr.bf16.mxu0 %v566
    %630 = vmatpush1.bf16.msra.mxu0 %v565
    %631 = vmatprep.subr.bf16.mxu0 %v568
    %632 = vmatpush1.bf16.msra.mxu0 %v567
    %633 = vmatprep.subr.bf16.mxu0 %v570
    %634 = vmatpush1.bf16.msra.mxu0 %v569
    %635 = vmatprep.subr.bf16.mxu0 %v572
    %636 = vmatpush1.bf16.msra.mxu0 %v571
    %637 = vmatprep.mubr.bf16.mxu0 %v401
    %638 = vmatmul.mubr.bf16.gmra.mrb[0].mxu0 %v400
    %v639 = vpop.f32.mrb[0].mxu0
    %v640 = vadd.f32 %v438, %v639
    %v641 = vpop.f32.mrb[0].mxu0
    %v642 = vadd.f32 %v442, %v641
    %v643 = vpop.f32.mrb[0].mxu0
    %v644 = vpop.f32.mrb[0].mxu0
    %645 = vdwg.mxu0
    %v646 = vtanh.pop %v642
    %v647 = vadd.f32 %v646, 1.0
    %v648 = vmul.f32 %v647, 3.5
    %v649 = vadd.f32 %v648, -5.0
    %650 = vst [vmem:[#allocation10] sm:$0xff] %v640
    %651 = vst [vmem:[#allocation10 + $0x8] sm:$0xff] %v649
    // Predicated region
    $region38: #{tpu_custom_call.1} parent=1 // pred_check
      _
    $region39: #{tpu_custom_call.1} parent=1 // pred_check_branch
      %653 = sbr.rel (0) target = $region41
    $region40: #{tpu_custom_call.1} parent=1 // pred_region
      %s655 = ssub.s32 256, 256
      %656 = vsyncadd [#allocation4], %s655
      %s658 = sshll.u32 [#allocation10], 4
      %s659 = int_to_ptr.vmem [resolvable:$true] %s658
      %661 = dma.vmem_to_hbm [thread:$0]  %s659, 256, %s5, [#allocation4]
    $region41: #{tpu_custom_call.1} parent=1 // pred_fallthru
      _
    // Predicated region
    $region42: #{tpu_custom_call.1} parent=1 // pred_check
      _
    $region43: #{tpu_custom_call.1} parent=1 // pred_check_branch
      %663 = sbr.rel (0) target = $region45
    $region44: #{tpu_custom_call.1} parent=1 // pred_region
      %664 = dma.done [#allocation4], 256
    $region45: #{tpu_custom_call.1} parent=1 // pred_fallthru
      _
    %665 = vsyncpa [#allocation3], 1
    %666 = vsyncpa [#allocation6], 1
    %667 = vsyncpa [#allocation9], 1
    %668 = vsyncpa [#allocation4], 1

</llo_original>
